<compile_context>
chip_gen: v7x
topology: tpu7x:2x2x1
jax: 0.10.0
libtpu: 0.0.40
codegen_flags: <defaults>
</compile_context>

<pallas_src>
import jax
import jax.numpy as jnp
from jax import lax
from jax.experimental import pallas as pl
from jax.experimental.pallas import tpu as pltpu


def _sigmoid(x):
    # Exact sigmoid via tanh: one EUP transcendental per element.
    return 0.5 * jnp.tanh(0.5 * x) + 0.5


def _dot_kernel(zc_ref, zall_ref, out_ref):
    # out = sigmoid(z_c_tile @ z_all_tile.T) -- contraction over the shared
    # last dim D, single MXU matmul per (tm, tn) tile.
    g = jnp.einsum('md,nd->mn', zc_ref[...], zall_ref[...],
                   preferred_element_type=jnp.float32)
    out_ref[...] = _sigmoid(g).astype(out_ref.dtype)


def _ed_kernel(inv_a_ref, b_ref, zc_ref, zall_ref, zall_sq_ref, out_ref):
    # Euclidean distance via the matmul trick:  d^2 = ||x||^2 + ||y||^2 - 2 x.y
    zc = zc_ref[...]                                                # (tm, D)
    g = jnp.einsum('md,nd->mn', zc, zall_ref[...],
                   preferred_element_type=jnp.float32)              # (tm, tn)
    zc_sq = jnp.sum(zc * zc, axis=-1, keepdims=True)                # (tm, 1)
    d2 = jnp.maximum(zc_sq + zall_sq_ref[...] - 2.0 * g, 0.0)
    # 1/(d + 1e-8) ~= rsqrt(d2 + 1e-16): one EUP op instead of sqrt + divide;
    # at d == 0 this gives 1e8 -> sigmoid saturates to 1, matching the ref.
    x = lax.rsqrt(d2 + 1e-16)
    s = x * inv_a_ref[0] - b_ref[0]
    out_ref[...] = _sigmoid(s).astype(out_ref.dtype)


def _round_up(x, m):
    return ((x + m - 1) // m) * m


def edge_decoder_forward(z_c, z_t, a, b, method, *,
                         block_m=256, block_n=2048, out_dtype=jnp.float32):
    """z_c: (Nc, D), z_t: (Nt, D), a/b: (1,) params, method: 'dot' | 'ed'."""
    Nc, D = z_c.shape
    Nt, Dt = z_t.shape
    assert D == Dt
    N = Nc + Nt

    # Eval-mode dropout == identity.
    z_c = z_c.astype(jnp.float32)
    z_t = z_t.astype(jnp.float32)
    z_all = jnp.concatenate([z_c, z_t], axis=0)                     # (N, D)

    # --- Tile sizes & padding -------------------------------------------------
    # Rows: multiple of 8 (sublane).  Columns: multiple of 128 (lane-dense,
    # unmasked stores).  Pad the inputs, slice the outputs.
    tm = min(block_m, _round_up(Nc, 8))
    tm = max(8, tm - (tm % 8))
    tn = min(block_n, _round_up(N, 128))
    tn = max(128, tn - (tn % 128))

    Mp = _round_up(Nc, tm)
    Np = _round_up(N, tn)

    zc_p = jnp.pad(z_c, ((0, Mp - Nc), (0, 0)))
    zall_p = jnp.pad(z_all, ((0, Np - N), (0, 0)))

    grid = (Mp // tm, Np // tn)

    out_shape = jax.ShapeDtypeStruct((Mp, Np), out_dtype)
    out_spec = pl.BlockSpec((tm, tn), lambda i, j: (i, j))
    zc_spec = pl.BlockSpec((tm, D), lambda i, j: (i, 0))
    zall_spec = pl.BlockSpec((tn, D), lambda i, j: (j, 0))

    # VMEM budget (double-buffered output tile dominates); 48 MiB cap is safe
    # on v5e/v6e (128 MiB physical) and v7x (64 MiB physical).
    out_bytes = 2 * tm * tn * jnp.dtype(out_dtype).itemsize
    in_bytes = 2 * (tm + tn) * max(D, 128) * 4 + 2 * 8 * tn * 4
    vmem_limit = int(min(max(out_bytes + in_bytes + (4 << 20), 16 << 20), 48 << 20))

    cp = pltpu.CompilerParams(
        dimension_semantics=("parallel", "parallel"),
        vmem_limit_bytes=vmem_limit,
    )

    if method == 'dot':
        slab = pl.pallas_call(
            _dot_kernel,
            out_shape=out_shape,
            grid=grid,
            in_specs=[zc_spec, zall_spec],
            out_specs=out_spec,
            compiler_params=cp,
        )(zc_p, zall_p)
    elif method == 'ed':
        # Parameter algebra + RHS squared row norms done once outside the kernel.
        zall_sq = jnp.sum(zall_p * zall_p, axis=-1).reshape(1, Np).astype(jnp.float32)
        inv_a = (1.0 / a).reshape(1).astype(jnp.float32)
        b_s = b.reshape(1).astype(jnp.float32)
        smem_spec = pl.BlockSpec(memory_space=pltpu.MemorySpace.SMEM)
        zall_sq_spec = pl.BlockSpec((1, tn), lambda i, j: (0, j))
        slab = pl.pallas_call(
            _ed_kernel,
            out_shape=out_shape,
            grid=grid,
            in_specs=[smem_spec, smem_spec, zc_spec, zall_spec, zall_sq_spec],
            out_specs=out_spec,
            compiler_params=cp,
        )(inv_a, b_s, zc_p, zall_p, zall_sq)
    else:
        raise ValueError(f"unknown method: {method!r}")

    # Split the fused output slab and drop padding in the wrapper.
    A_pred = slab[:Nc, :Nc]
    B_pred = slab[:Nc, Nc:N]
    return A_pred, B_pred


def reference_forward(z_c, z_t, a, b, method):
    """Pure-JAX reference (eval-mode PyTorch semantics)."""
    a_s = a[0]
    b_s = b[0]
    if method == 'dot':
        A = jax.nn.sigmoid(z_c @ z_c.T)
        B = jax.nn.sigmoid(z_c @ z_t.T)
    elif method == 'ed':
        eps = 1e-8
        d_cc = jnp.sqrt(jnp.sum((z_c[:, None, :] - z_c[None, :, :]) ** 2, axis=-1))
        A = jax.nn.sigmoid((1.0 / (d_cc + eps)) / a_s - b_s)
        d_ct = jnp.sqrt(jnp.sum((z_c[:, None, :] - z_t[None, :, :]) ** 2, axis=-1))
        B = jax.nn.sigmoid((1.0 / (d_ct + eps)) / a_s - b_s)
    else:
        raise ValueError(method)
    return A, B


if __name__ == "__main__":
    # Small latent tensors (real model uses latent dim 2).  Nc deliberately not
    # a multiple of 8 and N > 128 so row/column padding AND multi-tile grids in
    # both axes are exercised.
    Nc, Nt, D = 70, 90, 16

    key = jax.random.PRNGKey(0)
    kc, kt = jax.random.split(key)
    z_c = jax.random.normal(kc, (Nc, D), jnp.float32)
    z_t = jax.random.normal(kt, (Nt, D), jnp.float32)
    a = jnp.full((1,), 1.65, jnp.float32)   # nn.init.constant_(self.a, 1.65)
    b = jnp.full((1,), 10.0, jnp.float32)   # nn.init.constant_(self.b, 10)

    # Small block sizes force a (3, 2) grid at this demo size so the tiled,
    # double-buffered path is exercised; production sizes use the defaults.
    A_dot, B_dot = edge_decoder_forward(z_c, z_t, a, b, 'dot', block_m=32, block_n=128)
    A_ed, B_ed = edge_decoder_forward(z_c, z_t, a, b, 'ed', block_m=32, block_n=128)
    jax.block_until_ready((A_dot, B_dot, A_ed, B_ed))

    A_dot_r, B_dot_r = reference_forward(z_c, z_t, a, b, 'dot')
    A_ed_r, B_ed_r = reference_forward(z_c, z_t, a, b, 'ed')

    assert A_dot.shape == (Nc, Nc) and B_dot.shape == (Nc, Nt)
    assert jnp.allclose(A_dot, A_dot_r, atol=1e-5), "A_pred (dot) mismatch"
    assert jnp.allclose(B_dot, B_dot_r, atol=1e-5), "B_pred (dot) mismatch"
    assert jnp.allclose(A_ed, A_ed_r, atol=1e-4), "A_pred (ed) mismatch"
    assert jnp.allclose(B_ed, B_ed_r, atol=1e-4), "B_pred (ed) mismatch"

    print("KERNEL_OK")
</pallas_src>

<mosaic_0001>
module attributes {stable_mosaic.version = 11 : i64} {
  func.func @_dot_kernel(%arg0: i32, %arg1: i32, %arg2: memref<32x16xf32, #tpu.memory_space<vmem>>, %arg3: memref<128x16xf32, #tpu.memory_space<vmem>>, %arg4: memref<32x128xf32, #tpu.memory_space<vmem>>) attributes {dimension_semantics = [#tpu.dimension_semantics<parallel>, #tpu.dimension_semantics<parallel>], iteration_bounds = array<i64: 3, 2>, scalar_prefetch = 0 : i64, scratch_operands = 0 : i64, tpu.core_type = #tpu.core_type<tc>, window_params = [{transform_indices = @transform_0, window_bounds = array<i64: 32, 16>}, {transform_indices = @transform_1, window_bounds = array<i64: 128, 16>}, {transform_indices = @transform_2, window_bounds = array<i64: 32, 128>}]} {
    %c0 = arith.constant 0 : index
    %c0_0 = arith.constant 0 : index
    %0 = vector.load %arg2[%c0, %c0_0] : memref<32x16xf32, #tpu.memory_space<vmem>>, vector<32x16xf32>
    %c0_1 = arith.constant 0 : index
    %c0_2 = arith.constant 0 : index
    %1 = vector.load %arg3[%c0_1, %c0_2] : memref<128x16xf32, #tpu.memory_space<vmem>>, vector<128x16xf32>
    "tpu.trace_start"() <{level = 10 : i32, message = "md,nd->mn"}> : () -> ()
    %cst = arith.constant dense<0.000000e+00> : vector<32x128xf32>
    %2 = tpu.matmul %0, %1, %cst {dimension_numbers = #tpu.dot_dimension_numbers<[1], [1], [0], [0], [0, 0, 1, 0], [], []>} : vector<32x16xf32>, vector<128x16xf32>, vector<32x128xf32> -> vector<32x128xf32>
    "tpu.trace_stop"() : () -> ()
    %cst_3 = arith.constant 5.000000e-01 : f32
    %3 = vector.broadcast %cst_3 : f32 to vector<32x128xf32>
    %4 = arith.mulf %3, %2 : vector<32x128xf32>
    %5 = math.tanh %4 : vector<32x128xf32>
    %cst_4 = arith.constant 5.000000e-01 : f32
    %6 = vector.broadcast %cst_4 : f32 to vector<32x128xf32>
    %7 = arith.mulf %6, %5 : vector<32x128xf32>
    %cst_5 = arith.constant 5.000000e-01 : f32
    %8 = vector.broadcast %cst_5 : f32 to vector<32x128xf32>
    %9 = arith.addf %7, %8 : vector<32x128xf32>
    %c0_6 = arith.constant 0 : index
    %c0_7 = arith.constant 0 : index
    %10 = vector.load %arg4[%c0_6, %c0_7] : memref<32x128xf32, #tpu.memory_space<vmem>>, vector<32x128xf32>
    tpu.vector_store %arg4[%c0_6, %c0_7], %9 {strides = array<i32>} : memref<32x128xf32, #tpu.memory_space<vmem>>, vector<32x128xf32>,
    return
  }
  func.func @transform_0(%arg0: i32, %arg1: i32) -> (i32, i32) {
    %c0_i32 = arith.constant 0 : i32
    %c0_i32_0 = arith.constant 0 : i32
    return %arg0, %c0_i32 : i32, i32
  }
  func.func @transform_1(%arg0: i32, %arg1: i32) -> (i32, i32) {
    %c0_i32 = arith.constant 0 : i32
    %c0_i32_0 = arith.constant 0 : i32
    return %arg1, %c0_i32 : i32, i32
  }
  func.func @transform_2(%arg0: i32, %arg1: i32) -> (i32, i32) {
    %c0_i32 = arith.constant 0 : i32
    return %arg0, %arg1 : i32, i32
  }
}

</mosaic_0001>

<llo_original>
// kernel: tpu_custom_call.1
$region0: #{tpu_custom_call.1}
  #allocation0 [shape = 'u32[]', space=smem, size = 0x4, offset = 0x4, fixed_abs, tag = 'smem constant byte address 0x4 - core index']
  #allocation1 [shape = 'u32[144,128]{1,0:T(1,128)}', space=vmem, size = 0x12000, scoped, tag = 'internal scratch']
  %s0 = inlined_call_operand.vmem [shape: f32[96,16], index: 0, kind: input, shape index: {}]
  %s1 = inlined_call_operand.vmem [shape: f32[256,16], index: 1, kind: input, shape index: {}]
  %s2 = inlined_call_operand.hbm [shape: f32[96,256], index: 2, kind: output, shape index: {}]
  %s3 = sld [smem:[#allocation0]]
  $region41: #{tpu_custom_call.1} parent=0
    _
  %s5 = ssub.s32 1, %s3
  %s6 = scalar_select 0, %s5, %s3
  $region1: #{tpu_custom_call.1} parent=0
    #allocation2 [shape = 'u8[32768]{0}', space=vmem, size = 0x8000, scoped, tag = 'output window, operand 0']
    #allocation3 [shape = 's32[2]{0}', space=sflag, size = 0x8, scoped, tag = 'scoped memory for tpu_custom_call.1']
    %7 = vsyncpa [#allocation3], 0
    %s8 = scalar_lea.sflag [#allocation3], 1
    %9 = vsyncpa %s8, 0
    loop: start=0, step=1, limit=8
    $region2: #{tpu_custom_call.1} parent=1 // loop_pre_header
      _
    $region3: #{tpu_custom_call.1} parent=1 // loop_header
      %s11 = sphi 0, %s15
      %p12 = scmp.ge.s32.totalorder %s11, 8
      %s18 = sphi 0, %s30
      %s19 = sphi 0, %s26
      %s20 = sphi 0, %s18
      %s21 = sphi 0, %s19
      %s22 = sphi 0, %s20
      %s23 = sphi 0, %s21
      %s33 = sphi 0, %s35
      %s36 = sphi 0, %s33
      %s37 = sphi 0, %s36
      %s53 = sphi 0, %s37
      %s59 = sphi 0, %s61
      %s62 = sphi 0, %s59
      %s63 = sphi 0, %s62
      %s79 = sphi 0, %s63
      %s87 = sphi 0, %s89
      %s90 = sphi 0, %s87
      %s91 = sphi 0, %s90
      %s107 = sphi 0, %s91
    $region4: #{tpu_custom_call.1} parent=1 // loop_header_branch
      %14 = sbr.rel (%p12) target = $region8
    $region5: #{tpu_custom_call.1} parent=1 // loop_body
      %s16 = ssub.s32 %s11, 1
      %s17 = ssub.s32 %s11, 2
      %s24 = sadd.s32 1, %s19
      %p25 = scmp.ge.s32.totalorder %s24, 2
      %s26 = scalar_select %p25, 0, %s24
      %s27 = sadd.s32 1, %s18
      %s28 = scalar_select %p25, %s27, %s18
      %p29 = scmp.ge.s32.totalorder %s28, 3
      %s30 = scalar_select %p29, 0, %s28
      %s31 = ssub.s32 %s18, %s30
      %p32 = scmp.eq.s32.totalorder %s31, 0
      %s34 = sadd.s32 %s33, 1
      %s35 = scalar_select %p32, %s33, %s34
      %p38 = pneg %p32
      %p39 = scmp.eq.s32.totalorder %s11, 5
      %p40 = por %p38, %p39
      %p41 = scmp.ne.s32.totalorder %s33, %s36
      %p42 = scmp.eq.s32.totalorder %s11, 0
      %p43 = por %p41, %p42
      %p44 = scmp.ne.s32.totalorder %s33, %s36
      %p45 = scmp.eq.s32.totalorder %s16, 5
      %p46 = por %p44, %p45
      %p47 = scmp.ne.s32.totalorder %s36, %s37
      %p48 = scmp.eq.s32.totalorder %s16, 0
      %p49 = por %p47, %p48
      %p50 = scmp.ne.s32.totalorder %s36, %s37
      %p51 = scmp.eq.s32.totalorder %s17, 5
      %p52 = por %p50, %p51
      %p54 = scmp.ne.s32.totalorder %s37, %s53
      %p55 = scmp.eq.s32.totalorder %s17, 0
      %p56 = por %p54, %p55
      %s57 = ssub.s32 %s19, %s26
      %p58 = scmp.eq.s32.totalorder %s57, 0
      %s60 = sadd.s32 %s59, 1
      %s61 = scalar_select %p58, %s59, %s60
      %p64 = pneg %p58
      %p65 = scmp.eq.s32.totalorder %s11, 5
      %p66 = por %p64, %p65
      %p67 = scmp.ne.s32.totalorder %s59, %s62
      %p68 = scmp.eq.s32.totalorder %s11, 0
      %p69 = por %p67, %p68
      %p70 = scmp.ne.s32.totalorder %s59, %s62
      %p71 = scmp.eq.s32.totalorder %s16, 5
      %p72 = por %p70, %p71
      %p73 = scmp.ne.s32.totalorder %s62, %s63
      %p74 = scmp.eq.s32.totalorder %s16, 0
      %p75 = por %p73, %p74
      %p76 = scmp.ne.s32.totalorder %s62, %s63
      %p77 = scmp.eq.s32.totalorder %s17, 5
      %p78 = por %p76, %p77
      %p80 = scmp.ne.s32.totalorder %s63, %s79
      %p81 = scmp.eq.s32.totalorder %s17, 0
      %p82 = por %p80, %p81
      %s83 = ssub.s32 %s18, %s30
      %s84 = ssub.s32 %s19, %s26
      %s85 = sor.u32 %s83, %s84
      %p86 = scmp.eq.s32.totalorder %s85, 0
      %s88 = sadd.s32 %s87, 1
      %s89 = scalar_select %p86, %s87, %s88
      %p92 = pneg %p86
      %p93 = scmp.eq.s32.totalorder %s11, 5
      %p94 = por %p92, %p93
      %p95 = scmp.ne.s32.totalorder %s87, %s90
      %p96 = scmp.eq.s32.totalorder %s11, 0
      %p97 = por %p95, %p96
      %p98 = scmp.ne.s32.totalorder %s87, %s90
      %p99 = scmp.eq.s32.totalorder %s16, 5
      %p100 = por %p98, %p99
      %p101 = scmp.ne.s32.totalorder %s90, %s91
      %p102 = scmp.eq.s32.totalorder %s16, 0
      %p103 = por %p101, %p102
      %p104 = scmp.ne.s32.totalorder %s90, %s91
      %p105 = scmp.eq.s32.totalorder %s17, 5
      %p106 = por %p104, %p105
      %p108 = scmp.ne.s32.totalorder %s91, %s107
      %p109 = scmp.eq.s32.totalorder %s17, 0
      %p110 = por %p108, %p109
      %p111 = scmp.le.s32.totalorder 1, %s11
      %p112 = scmp.lt.s32.totalorder %s11, 7
      %p113 = pnand %p111, %p112
      %p114 = pneg %p113
      // Predicated region
      $region9: #{tpu_custom_call.1} parent=5 // pred_check
        _
      $region10: #{tpu_custom_call.1} parent=5 // pred_check_branch
        %116 = sbr.rel (%p113) target = $region12
      $region11: #{tpu_custom_call.1} parent=5 // pred_region
        %s117 = ssub.s32 %s11, 1
      $region12: #{tpu_custom_call.1} parent=5 // pred_fallthru
        _
      %p118 = scmp.lt.s32.totalorder %s11, 6
      // Predicated region
      $region13: #{tpu_custom_call.1} parent=5 // pred_check
        %p119 = pneg %p118
      $region14: #{tpu_custom_call.1} parent=5 // pred_check_branch
        %121 = sbr.rel (%p119) target = $region16
      $region15: #{tpu_custom_call.1} parent=5 // pred_region
        // Predicated region
        $region17: #{tpu_custom_call.1} parent=15 // pred_check
          %p122 = pneg %p43
        $region18: #{tpu_custom_call.1} parent=15 // pred_check_branch
          %124 = sbr.rel (%p122) target = $region20
        $region19: #{tpu_custom_call.1} parent=15 // pred_region
          %s125 = smul.u32 4, %s18
          %p126 = scmp.lt.s32.totalorder %s125, 11
          %s127 = scalar_select %p126, %s125, 11
          %s128 = smul.addr %s127, 8
          %s129 = scalar_lea.vmem %s0, %s128
          %s130 = smul.u32 4, %s18
        $region20: #{tpu_custom_call.1} parent=15 // pred_fallthru
          _
        // Predicated region
        $region21: #{tpu_custom_call.1} parent=15 // pred_check
          %p131 = pneg %p69
        $region22: #{tpu_custom_call.1} parent=15 // pred_check_branch
          %133 = sbr.rel (%p131) target = $region24
        $region23: #{tpu_custom_call.1} parent=15 // pred_region
          %s134 = smul.u32 16, %s19
          %p135 = scmp.lt.s32.totalorder %s134, 31
          %s136 = scalar_select %p135, %s134, 31
          %s137 = smul.addr %s136, 8
          %s138 = scalar_lea.vmem %s1, %s137
          %s139 = smul.u32 16, %s19
        $region24: #{tpu_custom_call.1} parent=15 // pred_fallthru
          _
      $region16: #{tpu_custom_call.1} parent=5 // pred_fallthru
        _
      %p140 = scmp.le.s32.totalorder 1, %s11
      %p141 = scmp.lt.s32.totalorder %s11, 7
      %p142 = pnand %p140, %p141
      %p143 = pneg %p142
      // Predicated region
      $region25: #{tpu_custom_call.1} parent=5 // pred_check
        _
      $region26: #{tpu_custom_call.1} parent=5 // pred_check_branch
        %145 = sbr.rel (%p142) target = $region28
      $region27: #{tpu_custom_call.1} parent=5 // pred_region
        %s146 = ssub.s32 %s11, 1
        %s147 = smul.u32 4, %s20
        %p148 = scmp.lt.s32.totalorder %s147, 11
        %s149 = scalar_select %p148, %s147, 11
        %s150 = smul.addr %s149, 8
        %s151 = scalar_lea.vmem %s0, %s150
        %p152 = pneg %p49
        %p153 = pneg %p46
        %s154 = smul.u32 16, %s21
        %p155 = scmp.lt.s32.totalorder %s154, 31
        %s156 = scalar_select %p155, %s154, 31
        %s157 = smul.addr %s156, 8
        %s158 = scalar_lea.vmem %s1, %s157
        %p159 = pneg %p75
        %p160 = pneg %p72
        %p161 = pneg %p103
        %p162 = pneg %p100
        %s163 = sand.u32 %s90, 1
        %s164 = scalar_lea.sflag [#allocation3], %s163
        %s165 = sand.u32 %s90, 1
        %s166 = smul.addr %s165, 32
        %s167 = scalar_lea.vmem [#allocation2], %s166
        %s168 = smul.u32 4, %s20
        %p169 = scmp.lt.s32.totalorder %s168, 11
        %s170 = scalar_select %p169, %s168, 11
        %s171 = smul.addr %s170, 8
        %s172 = scalar_lea.vmem %s0, %s171
        %s173 = smul.u32 4, %s20
        %s174 = smul.u32 16, %s21
        %p175 = scmp.lt.s32.totalorder %s174, 31
        %s176 = scalar_select %p175, %s174, 31
        %s177 = smul.addr %s176, 8
        %s178 = scalar_lea.vmem %s1, %s177
        %s179 = smul.u32 16, %s21
        %s180 = smul.u32 4, %s20
        %v181 = vld [vmem:[%s172] sm:$0xff]
        %v182 = vld [vmem:[%s172 + $0x8] sm:$0xff]
        %v183 = vld [vmem:[%s172 + $0x10] sm:$0xff]
        %v184 = vld [vmem:[%s172 + $0x18] sm:$0xff]
        %v185 = vld [vmem:[%s178] sm:$0xff]
        %v186 = vld [vmem:[%s178 + $0x8] sm:$0xff]
        %v187 = vld [vmem:[%s178 + $0x10] sm:$0xff]
        %v188 = vld [vmem:[%s178 + $0x18] sm:$0xff]
        %v189 = vld [vmem:[%s178 + $0x20] sm:$0xff]
        %v190 = vld [vmem:[%s178 + $0x28] sm:$0xff]
        %v191 = vld [vmem:[%s178 + $0x30] sm:$0xff]
        %v192 = vld [vmem:[%s178 + $0x38] sm:$0xff]
        %v193 = vld [vmem:[%s178 + $0x40] sm:$0xff]
        %v194 = vld [vmem:[%s178 + $0x48] sm:$0xff]
        %v195 = vld [vmem:[%s178 + $0x50] sm:$0xff]
        %v196 = vld [vmem:[%s178 + $0x58] sm:$0xff]
        %v197 = vld [vmem:[%s178 + $0x60] sm:$0xff]
        %v198 = vld [vmem:[%s178 + $0x68] sm:$0xff]
        %v199 = vld [vmem:[%s178 + $0x70] sm:$0xff]
        %v200 = vld [vmem:[%s178 + $0x78] sm:$0xff]
        %vm201 = vcmask 130048
        %v203 = vsel %vm201, %v181, 0
        %v206 = vsel %vm201, %v182, 0
        %v209 = vsel %vm201, %v183, 0
        %v212 = vsel %vm201, %v184, 0
        %v215 = vsel %vm201, %v185, 0
        %v218 = vsel %vm201, %v186, 0
        %v221 = vsel %vm201, %v187, 0
        %v224 = vsel %vm201, %v188, 0
        %v227 = vsel %vm201, %v189, 0
        %v230 = vsel %vm201, %v190, 0
        %v233 = vsel %vm201, %v191, 0
        %v236 = vsel %vm201, %v192, 0
        %v239 = vsel %vm201, %v193, 0
        %v242 = vsel %vm201, %v194, 0
        %v245 = vsel %vm201, %v195, 0
        %v248 = vsel %vm201, %v196, 0
        %v251 = vsel %vm201, %v197, 0
        %v254 = vsel %vm201, %v198, 0
        %v257 = vsel %vm201, %v199, 0
        %v260 = vsel %vm201, %v200, 0
        %262 = vmatprep.subr.mxu0 0.0
        %263 = vmatpush1.xpose.msra.mxu0 %v215
        %264 = vmatprep.subr.mxu0 0.0
        %265 = vmatpush1.xpose.msra.mxu0 %v218
        %266 = vmatprep.subr.mxu0 0.0
        %267 = vmatpush1.xpose.msra.mxu0 %v221
        %268 = vmatprep.subr.mxu0 0.0
        %269 = vmatpush1.xpose.msra.mxu0 %v224
        %270 = vmatprep.subr.mxu0 0.0
        %271 = vmatpush1.xpose.msra.mxu0 %v227
        %272 = vmatprep.subr.mxu0 0.0
        %273 = vmatpush1.xpose.msra.mxu0 %v230
        %274 = vmatprep.subr.mxu0 0.0
        %275 = vmatpush1.xpose.msra.mxu0 %v233
        %276 = vmatprep.subr.mxu0 0.0
        %277 = vmatpush1.xpose.msra.mxu0 %v236
        %278 = vmatprep.subr.mxu0 0.0
        %279 = vmatpush1.xpose.msra.mxu0 %v239
        %280 = vmatprep.subr.mxu0 0.0
        %281 = vmatpush1.xpose.msra.mxu0 %v242
        %282 = vmatprep.subr.mxu0 0.0
        %283 = vmatpush1.xpose.msra.mxu0 %v245
        %284 = vmatprep.subr.mxu0 0.0
        %285 = vmatpush1.xpose.msra.mxu0 %v248
        %286 = vmatprep.subr.mxu0 0.0
        %287 = vmatpush1.xpose.msra.mxu0 %v251
        %288 = vmatprep.subr.mxu0 0.0
        %289 = vmatpush1.xpose.msra.mxu0 %v254
        %290 = vmatprep.subr.mxu0 0.0
        %291 = vmatpush1.xpose.msra.mxu0 %v257
        %292 = vmatprep.subr.mxu0 0.0
        %293 = vmatpush1.xpose.msra.mxu0 %v260
        %294 = vmatprep.subr.mxu0 0.0
        %295 = vmatpush1.xpose.msra.mxu0 0.0
        %296 = vmatprep.subr.mxu0 0.0
        %297 = vmatpush1.xpose.msra.mxu0 0.0
        %298 = vmatprep.subr.mxu0 0.0
        %299 = vmatpush1.xpose.msra.mxu0 0.0
        %300 = vmatprep.subr.mxu0 0.0
        %301 = vmatpush1.xpose.msra.mxu0 0.0
        %302 = vmatprep.subr.mxu0 0.0
        %303 = vmatpush1.xpose.msra.mxu0 0.0
        %304 = vmatprep.subr.mxu0 0.0
        %305 = vmatpush1.xpose.msra.mxu0 0.0
        %306 = vmatprep.subr.mxu0 0.0
        %307 = vmatpush1.xpose.msra.mxu0 0.0
        %308 = vmatprep.subr.mxu0 0.0
        %309 = vmatpush1.xpose.msra.mxu0 0.0
        %310 = vmatprep.subr.mxu0 0.0
        %311 = vmatpush1.xpose.msra.mxu0 0.0
        %312 = vmatprep.subr.mxu0 0.0
        %313 = vmatpush1.xpose.msra.mxu0 0.0
        %314 = vmatprep.subr.mxu0 0.0
        %315 = vmatpush1.xpose.msra.mxu0 0.0
        %316 = vmatprep.subr.mxu0 0.0
        %317 = vmatpush1.xpose.msra.mxu0 0.0
        %318 = vmatprep.subr.mxu0 0.0
        %319 = vmatpush1.xpose.msra.mxu0 0.0
        %320 = vmatprep.subr.mxu0 0.0
        %321 = vmatpush1.xpose.msra.mxu0 0.0
        %322 = vmatprep.subr.mxu0 0.0
        %323 = vmatpush1.xpose.msra.mxu0 0.0
        %324 = vmatprep.subr.mxu0 0.0
        %325 = vmatpush1.xpose.msra.mxu0 0.0
        %326 = vmatprep.mubr.f32.mxu0 0.0
        %327 = vmatmul.mubr.f32.gmra.mrb[0].mxu0 %v203
        %v328 = vpop.f32.mrb[0].mxu0
        %v329 = vadd.f32 0.0, %v328
        %v330 = vpop.f32.mrb[0].mxu0
        %331 = vmatprep.mubr.f32.mxu0 0.0
        %332 = vmatmul.mubr.f32.gmra.mrb[0].mxu0 %v206
        %v333 = vpop.f32.mrb[0].mxu0
        %v334 = vadd.f32 0.0, %v333
        %v335 = vpop.f32.mrb[0].mxu0
        %336 = vmatprep.mubr.f32.mxu0 0.0
        %337 = vmatmul.mubr.f32.gmra.mrb[0].mxu0 %v209
        %v338 = vpop.f32.mrb[0].mxu0
        %v339 = vadd.f32 0.0, %v338
        %v340 = vpop.f32.mrb[0].mxu0
        %341 = vmatprep.mubr.f32.mxu0 0.0
        %342 = vmatmul.mubr.f32.gmra.mrb[0].mxu0 %v212
        %v343 = vpop.f32.mrb[0].mxu0
        %v344 = vadd.f32 0.0, %v343
        %v345 = vpop.f32.mrb[0].mxu0
        %346 = vdwg.mxu0
        %v347 = vmul.f32 %v329, 0.5
        %v348 = vmul.f32 %v334, 0.5
        %v349 = vmul.f32 %v339, 0.5
        %v350 = vmul.f32 %v344, 0.5
        %v351 = vtanh.pop %v347
        %v352 = vtanh.pop %v348
        %v353 = vtanh.pop %v349
        %v354 = vtanh.pop %v350
        %v355 = vmul.f32 %v351, 0.5
        %v356 = vmul.f32 %v352, 0.5
        %v357 = vmul.f32 %v353, 0.5
        %v358 = vmul.f32 %v354, 0.5
        %v359 = vadd.f32 %v355, 0.5
        %v360 = vadd.f32 %v356, 0.5
        %v361 = vadd.f32 %v357, 0.5
        %v362 = vadd.f32 %v358, 0.5
        %363 = vst [vmem:[%s167] sm:$0xff] %v359
        %364 = vst [vmem:[%s167 + $0x8] sm:$0xff] %v360
        %365 = vst [vmem:[%s167 + $0x10] sm:$0xff] %v361
        %366 = vst [vmem:[%s167 + $0x18] sm:$0xff] %v362
        %s367 = sand.u32 %s90, 1
        %s368 = scalar_lea.sflag [#allocation3], %s367
        %s369 = sand.u32 %s90, 1
        %s370 = smul.addr %s369, 32
        %s371 = scalar_lea.vmem [#allocation2], %s370
        // Predicated region
        $region29: #{tpu_custom_call.1} parent=27 // pred_check
          %p372 = pneg %p100
        $region30: #{tpu_custom_call.1} parent=27 // pred_check_branch
          %374 = sbr.rel (%p372) target = $region32
        $region31: #{tpu_custom_call.1} parent=27 // pred_region
          %s375 = smul.u32 4, %s20
          %s377 = ssub.s32 512, 512
          %378 = vsyncadd %s368, %s377
          %s379 = smul.addr %s375, 2
          %s380 = sadd.s32 %s21, %s379
          %s381 = smul.addr %s380, 128
          %s382 = scalar_lea.hbm %s2, %s381
          %s383 = sshll.u32 %s371, 4
          %s384 = int_to_ptr.vmem [resolvable:$true] %s383
          %389 = dma.vmem_to_hbm [thread:$0]  %s384, 512, %s382, %s368, 128, 256, 8
        $region32: #{tpu_custom_call.1} parent=27 // pred_fallthru
          _
      $region28: #{tpu_custom_call.1} parent=5 // pred_fallthru
        _
      %p390 = scmp.le.s32.totalorder 2, %s11
      // Predicated region
      $region33: #{tpu_custom_call.1} parent=5 // pred_check
        %p391 = pneg %p390
      $region34: #{tpu_custom_call.1} parent=5 // pred_check_branch
        %393 = sbr.rel (%p391) target = $region36
      $region35: #{tpu_custom_call.1} parent=5 // pred_region
        %s394 = ssub.s32 %s11, 2
        // Predicated region
        $region37: #{tpu_custom_call.1} parent=35 // pred_check
          %p395 = pneg %p106
        $region38: #{tpu_custom_call.1} parent=35 // pred_check_branch
          %397 = sbr.rel (%p395) target = $region40
        $region39: #{tpu_custom_call.1} parent=35 // pred_region
          %s398 = sand.u32 %s91, 1
          %s399 = scalar_lea.sflag [#allocation3], %s398
          %s400 = sand.u32 %s91, 1
          %s401 = smul.addr %s400, 32
          %s402 = scalar_lea.vmem [#allocation2], %s401
          %403 = dma.done %s399, 512
        $region40: #{tpu_custom_call.1} parent=35 // pred_fallthru
          _
      $region36: #{tpu_custom_call.1} parent=5 // pred_fallthru
        _
    $region6: #{tpu_custom_call.1} parent=1 // loop_footer
      %s15 = sadd.s32 1, %s11
    $region7: #{tpu_custom_call.1} parent=1 // loop_footer_branch
      %10 = sbr.rel target = $region3
    $region8: #{tpu_custom_call.1} parent=1 // loop_exit
      _
    %404 = vsyncpa [#allocation3], 1
    %s405 = scalar_lea.sflag [#allocation3], 1
    %406 = vsyncpa %s405, 1

</llo_original>
